<compile_context>
chip_gen: v7x
topology: tpu7x:2x2x1
jax: 0.10.0
libtpu: 0.0.40
codegen_flags: <defaults>
</compile_context>

<pallas_src>
import jax
import jax.numpy as jnp
from jax.experimental import pallas as pl
from jax.experimental.pallas import tpu as pltpu


def _round_up(x, m):
    return ((x + m - 1) // m) * m


def _pick_tile(total, max_tile, multiple):
    """Largest tile <= max_tile that divides `total` and is a multiple of
    `multiple`; falls back to `total` (full-dim exception) if none exists."""
    if total <= max_tile:
        return total
    t = (max_tile // multiple) * multiple
    while t >= multiple:
        if total % t == 0:
            return t
        t -= multiple
    return total


# ---------------------------------------------------------------------------
# Kernel 1: conv stem  (im2col patches @ W + b, ReLU), tiled over rows
# ---------------------------------------------------------------------------
def _conv_relu_kernel(p_ref, w_ref, b_ref, o_ref):
    acc = jnp.dot(p_ref[...], w_ref[...], preferred_element_type=jnp.float32)
    acc = jnp.maximum(acc + b_ref[...], 0.0)
    o_ref[...] = acc.astype(o_ref.dtype)


def conv_stem(patches, w, b, *, tile_p):
    # patches: [P_pad, K] bf16 (K unpadded)   w: [K, Cp] bf16   b: [1, Cp] f32
    P, K = patches.shape
    Cp = w.shape[1]
    return pl.pallas_call(
        _conv_relu_kernel,
        out_shape=jax.ShapeDtypeStruct((P, Cp), jnp.bfloat16),
        grid=(P // tile_p,),
        in_specs=[
            pl.BlockSpec((tile_p, K), lambda i: (i, 0)),
            pl.BlockSpec((K, Cp), lambda i: (0, 0)),
            pl.BlockSpec((1, Cp), lambda i: (0, 0)),
        ],
        out_specs=pl.BlockSpec((tile_p, Cp), lambda i: (i, 0)),
        compiler_params=pltpu.CompilerParams(
            dimension_semantics=("parallel",)),
    )(patches, w, b)


# ---------------------------------------------------------------------------
# Kernel 2: MLP head.  Grid = (branch j in {subject, au}, F-reduction k).
#   xsa[j]  = x @ W[j] + b[j]
#   out[j]  = sigmoid( leaky_relu(xsa[j]) @ Wf + bf )   (only out[1] is used)
# Leading axis is "parallel" so on v7x each TensorCore streams its own half of
# the stacked weights; the F axis is the reduction with a resident accumulator.
# ---------------------------------------------------------------------------
def _head_kernel(x_ref, w_ref, b_ref, wf_ref, bf_ref, xsa_out, out_out, acc):
    k = pl.program_id(1)

    @pl.when(k == 0)
    def _():
        acc[...] = jnp.zeros_like(acc)

    acc[...] += jnp.dot(x_ref[...], w_ref[0],
                        preferred_element_type=jnp.float32)

    @pl.when(k == pl.num_programs(1) - 1)
    def _():
        xv = acc[...] + b_ref[0]
        xsa_out[0] = xv
        # nn.LeakyReLU default negative_slope = 0.01; exact sigmoid (finalize
        # runs once per branch, so this costs nothing on the hot loop).
        h = jnp.where(xv > 0, xv, 0.01 * xv).astype(wf_ref.dtype)
        logits = jnp.dot(h, wf_ref[...],
                         preferred_element_type=jnp.float32) + bf_ref[...]
        out_out[0] = 1.0 / (1.0 + jnp.exp(-logits))


def head(x, w_stack, b_stack, wf, bf, *, tile_f, vmem_limit_bytes):
    # x: [Bp, F] bf16   w_stack: [2, F, Dp] bf16   b_stack: [2, 1, Dp] f32
    # wf: [Dp, NCp] bf16   bf: [1, NCp] f32
    Bp, F = x.shape
    Dp = w_stack.shape[2]
    NCp = wf.shape[1]
    return pl.pallas_call(
        _head_kernel,
        out_shape=(
            jax.ShapeDtypeStruct((2, Bp, Dp), jnp.float32),   # [xs ; xa]
            jax.ShapeDtypeStruct((2, Bp, NCp), jnp.float32),  # sigmoid (use [1])
        ),
        grid=(2, F // tile_f),
        in_specs=[
            pl.BlockSpec((Bp, tile_f), lambda j, k: (0, k)),
            pl.BlockSpec((1, tile_f, Dp), lambda j, k: (j, k, 0)),
            pl.BlockSpec((1, 1, Dp), lambda j, k: (j, 0, 0)),
            pl.BlockSpec((Dp, NCp), lambda j, k: (0, 0)),
            pl.BlockSpec((1, NCp), lambda j, k: (0, 0)),
        ],
        out_specs=(
            pl.BlockSpec((1, Bp, Dp), lambda j, k: (j, 0, 0)),
            pl.BlockSpec((1, Bp, NCp), lambda j, k: (j, 0, 0)),
        ),
        scratch_shapes=[pltpu.VMEM((Bp, Dp), jnp.float32)],
        compiler_params=pltpu.CompilerParams(
            dimension_semantics=("parallel", "arbitrary"),
            vmem_limit_bytes=vmem_limit_bytes),
    )(x, w_stack, b_stack, wf, bf)


# ---------------------------------------------------------------------------
# Parameter preparation (once, off hot path): pad lanes, fold the NCHW flatten
# order into the head weight row permutation, stack subject/au weights, cast
# MXU operands to bf16.
# ---------------------------------------------------------------------------
def prepare_params(raw, *, in_ch, k, out_ch, out_size, d_m, num_class):
    K = in_ch * k * k
    # Channels padded only to sublane granularity (8), NOT to 128, so the head
    # reduction length F = Ho*Wo*Cp is not inflated when out_ch % 128 != 0.
    Cp = _round_up(out_ch, 8)
    Dp = _round_up(d_m, 128)
    NCp = _round_up(num_class, 128)
    Ho = Wo = out_size

    conv_w = jnp.zeros((K, Cp), jnp.float32).at[:, :out_ch].set(raw["conv_w"])
    conv_b = jnp.zeros((1, Cp), jnp.float32).at[:, :out_ch].set(raw["conv_b"])

    def fold(w):
        # w: [out_ch*Ho*Wo, d_m] in PyTorch (c, h, w) flatten order.
        # Re-order rows to the stem's (h, w, c) order and zero-pad to (Cp, Dp)
        # so the stem output feeds the head with a contiguous reshape only.
        w_r = w.reshape(out_ch, Ho, Wo, d_m).transpose(1, 2, 0, 3)
        w_p = jnp.zeros((Ho, Wo, Cp, Dp), jnp.float32)
        w_p = w_p.at[:, :, :out_ch, :d_m].set(w_r)
        return w_p.reshape(Ho * Wo * Cp, Dp)

    def pad_bias(b):
        return jnp.zeros((1, Dp), jnp.float32).at[:, :d_m].set(b)

    prepared = {
        "conv_w": conv_w.astype(jnp.bfloat16),
        "conv_b": conv_b,                                     # f32 epilogue bias
        "w_stack": jnp.stack([fold(raw["ws"]),
                              fold(raw["wa"])]).astype(jnp.bfloat16),
        "b_stack": jnp.stack([pad_bias(raw["bs"]), pad_bias(raw["ba"])]),
        "wf": jnp.zeros((Dp, NCp), jnp.float32)
                 .at[:d_m, :num_class].set(raw["wf"]).astype(jnp.bfloat16),
        "bf": jnp.zeros((1, NCp), jnp.float32).at[:, :num_class].set(raw["bf"]),
    }
    dims = dict(k=k, K=K, Cp=Cp, Dp=Dp, NCp=NCp, out_ch=out_ch,
                d_m=d_m, num_class=num_class, out_size=out_size)
    return prepared, dims


# ---------------------------------------------------------------------------
# Full forward
# ---------------------------------------------------------------------------
def model_forward(image, prepared, dims):
    """image: [N, T=2, C, H, W] -> (feature [N,2,d_m], output [N*2,num_class],
                                     x_subject [N*2,d_m], x_au [N*2,d_m])"""
    kk = dims["k"]
    K, Cp, Dp, NCp = dims["K"], dims["Cp"], dims["Dp"], dims["NCp"]
    d_m, num_class = dims["d_m"], dims["num_class"]

    N, T, C, H, W = image.shape
    B = N * T
    Ho, Wo = H // kk, W // kk

    # Pad batch to the head's sublane-packed row count BEFORE the im2col so the
    # stem output reshapes straight into the head input (no intermediate
    # slice / re-pad HBM round trip).
    Bp = _round_up(B, 16)
    P_pad = Bp * Ho * Wo

    # bf16 cast BEFORE the transpose halves the im2col's HBM traffic.
    x = image.astype(jnp.bfloat16).reshape(B, C, H, W)
    x = jnp.pad(x, ((0, Bp - B), (0, 0), (0, 0), (0, 0)))
    # im2col for stride == kernel: pure reshape/transpose glue (no compute).
    patches = (
        x.reshape(Bp, C, Ho, kk, Wo, kk)
        .transpose(0, 2, 4, 1, 3, 5)
        .reshape(P_pad, K)
    )

    # Big row tile for the HBM-bound stem (P_pad is a multiple of 16, so a
    # divisor always exists; small problems collapse to a single step).
    tile_p = _pick_tile(P_pad, 512, 16)
    feat = conv_stem(patches, prepared["conv_w"], prepared["conv_b"],
                     tile_p=tile_p)                      # [P_pad, Cp] bf16

    # Contiguous (h, w, c) flatten; the PyTorch NCHW flatten order is already
    # folded into the row permutation of w_stack.
    F = Ho * Wo * Cp
    x_flat = feat.reshape(Bp, F)

    # Deep reduction tile: keep grid-step overhead << weight DMA time, bounded
    # so double-buffered weight tiles fit v5e's 16 MiB scoped VMEM and leave
    # headroom under v7x's 64 MiB physical VMEM.
    tile_f = _pick_tile(F, 4096, 128)
    vmem_est = (
        2 * Bp * tile_f * 2              # x blocks (double-buffered, bf16)
        + 2 * tile_f * Dp * 2            # stacked-weight blocks
        + 2 * Dp * NCp * 2               # wf
        + 2 * (Bp * Dp + Bp * NCp) * 4   # output blocks
        + Bp * Dp * 4                    # accumulator scratch
        + (2 << 20)                      # margin
    )
    vmem_limit = int(min(max(2 * vmem_est, 16 << 20), 64 << 20))

    xsa, out_p = head(x_flat, prepared["w_stack"], prepared["b_stack"],
                      prepared["wf"], prepared["bf"],
                      tile_f=tile_f, vmem_limit_bytes=vmem_limit)

    x_subject = xsa[0, :B, :d_m]
    x_au = xsa[1, :B, :d_m]
    output = out_p[1, :B, :num_class]
    feature = x_au.reshape(N, T, d_m)
    return feature, output, x_subject, x_au


# ---------------------------------------------------------------------------
# Raw (PyTorch-layout) parameters and a pure-JAX reference for validation
# ---------------------------------------------------------------------------
def init_params(key, in_ch, k, out_ch, feat_dim, d_m, num_class):
    ks = jax.random.split(key, 8)
    s = 0.05
    return {
        "conv_w": s * jax.random.normal(ks[0], (in_ch * k * k, out_ch), jnp.float32),
        "conv_b": s * jax.random.normal(ks[1], (1, out_ch), jnp.float32),
        "ws": s * jax.random.normal(ks[2], (feat_dim, d_m), jnp.float32),
        "bs": s * jax.random.normal(ks[3], (1, d_m), jnp.float32),
        "wa": s * jax.random.normal(ks[4], (feat_dim, d_m), jnp.float32),
        "ba": s * jax.random.normal(ks[5], (1, d_m), jnp.float32),
        "wf": s * jax.random.normal(ks[6], (d_m, num_class), jnp.float32),
        "bf": s * jax.random.normal(ks[7], (1, num_class), jnp.float32),
    }


def reference_forward(image, raw, k):
    N, T, C, H, W = image.shape
    B = N * T
    Ho, Wo = H // k, W // k
    x = image.reshape(B, C, H, W)
    patches = (x.reshape(B, C, Ho, k, Wo, k).transpose(0, 2, 4, 1, 3, 5)
               .reshape(B * Ho * Wo, C * k * k))
    feat = jnp.maximum(patches @ raw["conv_w"] + raw["conv_b"], 0.0)
    Cout = raw["conv_w"].shape[1]
    feat = feat.reshape(B, Ho, Wo, Cout).transpose(0, 3, 1, 2)   # NCHW
    x_flat = feat.reshape(B, -1)                                  # (c, h, w) order
    xs = x_flat @ raw["ws"] + raw["bs"]
    xa = x_flat @ raw["wa"] + raw["ba"]
    h = jnp.where(xa > 0, xa, 0.01 * xa)
    out = jax.nn.sigmoid(h @ raw["wf"] + raw["bf"])
    return xa.reshape(N, T, -1), out, xs, xa


if __name__ == "__main__":
    # Small shapes consistent with the module: [N, 2, C, H, W].
    N, T, C, H, W = 2, 2, 3, 32, 32
    k = 4                       # conv stem kernel == stride
    out_ch = 8                  # stand-in for backbone output_channel
    out_size = H // k           # stand-in for backbone output_size (= 8)
    d_m = 32
    num_class = 4
    feat_dim = out_ch * out_size * out_size   # 512

    key = jax.random.PRNGKey(0)
    k_img, k_par = jax.random.split(key)
    image = jax.random.normal(k_img, (N, T, C, H, W), jnp.float32)
    raw = init_params(k_par, C, k, out_ch, feat_dim, d_m, num_class)
    prepared, dims = prepare_params(raw, in_ch=C, k=k, out_ch=out_ch,
                                    out_size=out_size, d_m=d_m,
                                    num_class=num_class)

    feature, output, x_subject, x_au = model_forward(image, prepared, dims)
    jax.block_until_ready((feature, output, x_subject, x_au))

    assert feature.shape == (N, T, d_m)
    assert output.shape == (N * T, num_class)
    assert x_subject.shape == (N * T, d_m)
    assert x_au.shape == (N * T, d_m)
    assert bool(jnp.all((output >= -1e-6) & (output <= 1.0 + 1e-6)))

    # Pure-JAX f32 reference (same stand-in architecture); bf16 MXU feeds
    # justify the loose tolerance.
    ref = reference_forward(image, raw, k)
    for got, want in zip((feature, output, x_subject, x_au), ref):
        assert float(jnp.max(jnp.abs(got - want))) < 5e-2, "mismatch vs reference"

    print("KERNEL_OK")
</pallas_src>

<mosaic_0001>
module attributes {stable_mosaic.version = 11 : i64} {
  func.func @_conv_relu_kernel(%arg0: i32, %arg1: memref<512x48xbf16, #tpu.memory_space<vmem>>, %arg2: memref<48x8xbf16, #tpu.memory_space<vmem>>, %arg3: memref<1x8xf32, #tpu.memory_space<vmem>>, %arg4: memref<512x8xbf16, #tpu.memory_space<vmem>>) attributes {dimension_semantics = [#tpu.dimension_semantics<parallel>], iteration_bounds = array<i64: 2>, scalar_prefetch = 0 : i64, scratch_operands = 0 : i64, tpu.core_type = #tpu.core_type<tc>, window_params = [{transform_indices = @transform_0, window_bounds = array<i64: 512, 48>}, {pipeline_mode = #tpu.pipeline_mode<synchronous>, transform_indices = @transform_1, window_bounds = array<i64: 48, 8>}, {pipeline_mode = #tpu.pipeline_mode<synchronous>, transform_indices = @transform_2, window_bounds = array<i64: 1, 8>}, {transform_indices = @transform_3, window_bounds = array<i64: 512, 8>}]} {
    %c0 = arith.constant 0 : index
    %c0_0 = arith.constant 0 : index
    %0 = vector.load %arg1[%c0, %c0_0] : memref<512x48xbf16, #tpu.memory_space<vmem>>, vector<512x48xbf16>
    %c0_1 = arith.constant 0 : index
    %c0_2 = arith.constant 0 : index
    %1 = vector.load %arg2[%c0_1, %c0_2] : memref<48x8xbf16, #tpu.memory_space<vmem>>, vector<48x8xbf16>
    %cst = arith.constant dense<0.000000e+00> : vector<512x8xf32>
    %2 = tpu.matmul %0, %1, %cst {dimension_numbers = #tpu.dot_dimension_numbers<[1], [0], [0], [1], [0, 0, 1, 1], [], []>} : vector<512x48xbf16>, vector<48x8xbf16>, vector<512x8xf32> -> vector<512x8xf32>
    %c0_3 = arith.constant 0 : index
    %c0_4 = arith.constant 0 : index
    %3 = vector.load %arg3[%c0_3, %c0_4] : memref<1x8xf32, #tpu.memory_space<vmem>>, vector<1x8xf32>
    %4 = vector.broadcast %3 : vector<1x8xf32> to vector<512x8xf32>
    %5 = arith.addf %2, %4 : vector<512x8xf32>
    %cst_5 = arith.constant 0.000000e+00 : f32
    %6 = vector.broadcast %cst_5 : f32 to vector<512x8xf32>
    %7 = arith.maximumf %5, %6 : vector<512x8xf32>
    %8 = arith.truncf %7 : vector<512x8xf32> to vector<512x8xbf16>
    %c0_6 = arith.constant 0 : index
    %c0_7 = arith.constant 0 : index
    %9 = vector.load %arg4[%c0_6, %c0_7] : memref<512x8xbf16, #tpu.memory_space<vmem>>, vector<512x8xbf16>
    tpu.vector_store %arg4[%c0_6, %c0_7], %8 {strides = array<i32>} : memref<512x8xbf16, #tpu.memory_space<vmem>>, vector<512x8xbf16>,
    return
  }
  func.func @transform_0(%arg0: i32) -> (i32, i32) {
    %c0_i32 = arith.constant 0 : i32
    %c0_i32_0 = arith.constant 0 : i32
    return %arg0, %c0_i32 : i32, i32
  }
  func.func @transform_1(%arg0: i32) -> (i32, i32) {
    %c0_i32 = arith.constant 0 : i32
    %c0_i32_0 = arith.constant 0 : i32
    %c0_i32_1 = arith.constant 0 : i32
    return %c0_i32, %c0_i32_0 : i32, i32
  }
  func.func @transform_2(%arg0: i32) -> (i32, i32) {
    %c0_i32 = arith.constant 0 : i32
    %c0_i32_0 = arith.constant 0 : i32
    %c0_i32_1 = arith.constant 0 : i32
    return %c0_i32, %c0_i32_0 : i32, i32
  }
  func.func @transform_3(%arg0: i32) -> (i32, i32) {
    %c0_i32 = arith.constant 0 : i32
    %c0_i32_0 = arith.constant 0 : i32
    return %arg0, %c0_i32 : i32, i32
  }
}

</mosaic_0001>

<llo_original>
// kernel: tpu_custom_call.1
$region0: #{tpu_custom_call.1}
  #allocation0 [shape = 'u32[]', space=smem, size = 0x4, offset = 0x4, fixed_abs, tag = 'smem constant byte address 0x4 - core index']
  #allocation1 [shape = 'u32[144,128]{1,0:T(1,128)}', space=vmem, size = 0x12000, scoped, tag = 'internal scratch']
  %s0 = inlined_call_operand.vmem [shape: bf16[1024,48], index: 0, kind: input, shape index: {}]
  %s1 = inlined_call_operand.vmem [shape: bf16[48,8], index: 1, kind: input, shape index: {}]
  %s2 = inlined_call_operand.vmem [shape: f32[1,8], index: 2, kind: input, shape index: {}]
  %s3 = inlined_call_operand.vmem [shape: bf16[1024,8], index: 3, kind: output, shape index: {}]
  %s4 = sld [smem:[#allocation0]]
  $region45: #{tpu_custom_call.1} parent=0
    _
  %s6 = ssub.s32 1, %s4
  %s7 = scalar_select 0, %s6, %s4
  loop: start=0, step=1, limit=4
  $region2: #{tpu_custom_call.1} parent=0 // loop_pre_header
    _
  $region3: #{tpu_custom_call.1} parent=0 // loop_header
    %s9 = sphi 0, %s13
    %p10 = scmp.ge.s32.totalorder %s9, 4
    %s19 = sphi 0, %s21
    %s22 = sphi 0, %s19
    %s23 = sphi 0, %s22
    %s39 = sphi 0, %s23
    %s43 = sphi 0, %s43
    %s45 = sphi 0, %s43
    %s46 = sphi 0, %s45
    %s60 = sphi 0, %s46
    %s64 = sphi 0, %s64
    %s66 = sphi 0, %s64
    %s67 = sphi 0, %s66
    %s81 = sphi 0, %s67
    %s87 = sphi 0, %s89
    %s90 = sphi 0, %s87
    %s91 = sphi 0, %s90
    %s107 = sphi 0, %s91
  $region4: #{tpu_custom_call.1} parent=0 // loop_header_branch
    %12 = sbr.rel (%p10) target = $region8
  $region5: #{tpu_custom_call.1} parent=0 // loop_body
    %s14 = ssub.s32 %s9, 1
    %s15 = ssub.s32 %s9, 2
    %s16 = sadd.s32 %s9, 1
    %s17 = ssub.s32 %s9, %s16
    %p18 = scmp.eq.s32.totalorder %s17, 0
    %s20 = sadd.s32 %s19, 1
    %s21 = scalar_select %p18, %s19, %s20
    %p24 = pneg %p18
    %p25 = scmp.eq.s32.totalorder %s9, 1
    %p26 = por %p24, %p25
    %p27 = scmp.ne.s32.totalorder %s19, %s22
    %p28 = scmp.eq.s32.totalorder %s9, 0
    %p29 = por %p27, %p28
    %p30 = scmp.ne.s32.totalorder %s19, %s22
    %p31 = scmp.eq.s32.totalorder %s14, 1
    %p32 = por %p30, %p31
    %p33 = scmp.ne.s32.totalorder %s22, %s23
    %p34 = scmp.eq.s32.totalorder %s14, 0
    %p35 = por %p33, %p34
    %p36 = scmp.ne.s32.totalorder %s22, %s23
    %p37 = scmp.eq.s32.totalorder %s15, 1
    %p38 = por %p36, %p37
    %p40 = scmp.ne.s32.totalorder %s23, %s39
    %p41 = scmp.eq.s32.totalorder %s15, 0
    %p42 = por %p40, %p41
    %s44 = sadd.s32 %s43, 1
    %p47 = scmp.eq.s32.totalorder %s9, 1
    %p48 = scmp.ne.s32.totalorder %s43, %s45
    %p49 = scmp.eq.s32.totalorder %s9, 0
    %p50 = por %p48, %p49
    %p51 = scmp.ne.s32.totalorder %s43, %s45
    %p52 = scmp.eq.s32.totalorder %s14, 1
    %p53 = por %p51, %p52
    %p54 = scmp.ne.s32.totalorder %s45, %s46
    %p55 = scmp.eq.s32.totalorder %s14, 0
    %p56 = por %p54, %p55
    %p57 = scmp.ne.s32.totalorder %s45, %s46
    %p58 = scmp.eq.s32.totalorder %s15, 1
    %p59 = por %p57, %p58
    %p61 = scmp.ne.s32.totalorder %s46, %s60
    %p62 = scmp.eq.s32.totalorder %s15, 0
    %p63 = por %p61, %p62
    %s65 = sadd.s32 %s64, 1
    %p68 = scmp.eq.s32.totalorder %s9, 1
    %p69 = scmp.ne.s32.totalorder %s64, %s66
    %p70 = scmp.eq.s32.totalorder %s9, 0
    %p71 = por %p69, %p70
    %p72 = scmp.ne.s32.totalorder %s64, %s66
    %p73 = scmp.eq.s32.totalorder %s14, 1
    %p74 = por %p72, %p73
    %p75 = scmp.ne.s32.totalorder %s66, %s67
    %p76 = scmp.eq.s32.totalorder %s14, 0
    %p77 = por %p75, %p76
    %p78 = scmp.ne.s32.totalorder %s66, %s67
    %p79 = scmp.eq.s32.totalorder %s15, 1
    %p80 = por %p78, %p79
    %p82 = scmp.ne.s32.totalorder %s67, %s81
    %p83 = scmp.eq.s32.totalorder %s15, 0
    %p84 = por %p82, %p83
    %s85 = ssub.s32 %s9, %s16
    %p86 = scmp.eq.s32.totalorder %s85, 0
    %s88 = sadd.s32 %s87, 1
    %s89 = scalar_select %p86, %s87, %s88
    %p92 = pneg %p86
    %p93 = scmp.eq.s32.totalorder %s9, 1
    %p94 = por %p92, %p93
    %p95 = scmp.ne.s32.totalorder %s87, %s90
    %p96 = scmp.eq.s32.totalorder %s9, 0
    %p97 = por %p95, %p96
    %p98 = scmp.ne.s32.totalorder %s87, %s90
    %p99 = scmp.eq.s32.totalorder %s14, 1
    %p100 = por %p98, %p99
    %p101 = scmp.ne.s32.totalorder %s90, %s91
    %p102 = scmp.eq.s32.totalorder %s14, 0
    %p103 = por %p101, %p102
    %p104 = scmp.ne.s32.totalorder %s90, %s91
    %p105 = scmp.eq.s32.totalorder %s15, 1
    %p106 = por %p104, %p105
    %p108 = scmp.ne.s32.totalorder %s91, %s107
    %p109 = scmp.eq.s32.totalorder %s15, 0
    %p110 = por %p108, %p109
    %p111 = scmp.le.s32.totalorder 1, %s9
    %p112 = scmp.lt.s32.totalorder %s9, 3
    %p113 = pnand %p111, %p112
    %p114 = pneg %p113
    // Predicated region
    $region9: #{tpu_custom_call.1} parent=5 // pred_check
      _
    $region10: #{tpu_custom_call.1} parent=5 // pred_check_branch
      %116 = sbr.rel (%p113) target = $region12
    $region11: #{tpu_custom_call.1} parent=5 // pred_region
      %s117 = ssub.s32 %s9, 1
      // Predicated region
      $region13: #{tpu_custom_call.1} parent=11 // pred_check
        %p118 = pneg %p56
      $region14: #{tpu_custom_call.1} parent=11 // pred_check_branch
        %120 = sbr.rel (%p118) target = $region16
      $region15: #{tpu_custom_call.1} parent=11 // pred_region
        _
      $region16: #{tpu_custom_call.1} parent=11 // pred_fallthru
        _
      // Predicated region
      $region17: #{tpu_custom_call.1} parent=11 // pred_check
        %p121 = pneg %p77
      $region18: #{tpu_custom_call.1} parent=11 // pred_check_branch
        %123 = sbr.rel (%p121) target = $region20
      $region19: #{tpu_custom_call.1} parent=11 // pred_region
        _
      $region20: #{tpu_custom_call.1} parent=11 // pred_fallthru
        _
    $region12: #{tpu_custom_call.1} parent=5 // pred_fallthru
      _
    %p124 = scmp.lt.s32.totalorder %s9, 2
    // Predicated region
    $region21: #{tpu_custom_call.1} parent=5 // pred_check
      %p125 = pneg %p124
    $region22: #{tpu_custom_call.1} parent=5 // pred_check_branch
      %127 = sbr.rel (%p125) target = $region24
    $region23: #{tpu_custom_call.1} parent=5 // pred_region
      // Predicated region
      $region25: #{tpu_custom_call.1} parent=23 // pred_check
        %p128 = pneg %p29
      $region26: #{tpu_custom_call.1} parent=23 // pred_check_branch
        %130 = sbr.rel (%p128) target = $region28
      $region27: #{tpu_custom_call.1} parent=23 // pred_region
        %s131 = smul.u32 64, %s9
        %p132 = scmp.lt.s32.totalorder %s131, 127
        %s133 = scalar_select %p132, %s131, 127
        %s134 = smul.addr %s133, 4
        %s135 = scalar_lea.vmem %s0, %s134
        %s136 = smul.u32 64, %s9
      $region28: #{tpu_custom_call.1} parent=23 // pred_fallthru
        _
    $region24: #{tpu_custom_call.1} parent=5 // pred_fallthru
      _
    %p137 = scmp.le.s32.totalorder 1, %s9
    %p138 = scmp.lt.s32.totalorder %s9, 3
    %p139 = pnand %p137, %p138
    %p140 = pneg %p139
    // Predicated region
    $region29: #{tpu_custom_call.1} parent=5 // pred_check
      _
    $region30: #{tpu_custom_call.1} parent=5 // pred_check_branch
      %142 = sbr.rel (%p139) target = $region32
    $region31: #{tpu_custom_call.1} parent=5 // pred_region
      %s143 = ssub.s32 %s9, 1
      %s144 = smul.u32 64, %s14
      %p145 = scmp.lt.s32.totalorder %s144, 127
      %s146 = scalar_select %p145, %s144, 127
      %s147 = smul.addr %s146, 4
      %s148 = scalar_lea.vmem %s0, %s147
      %p149 = pneg %p35
      %p150 = pneg %p32
      %p151 = pneg %p56
      %p152 = pneg %p53
      %p153 = pneg %p77
      %p154 = pneg %p74
      %p155 = pneg %p103
      %p156 = pneg %p100
      %s157 = smul.u32 64, %s14
      %p158 = scmp.lt.s32.totalorder %s157, 127
      %s159 = scalar_select %p158, %s157, 127
      %s160 = smul.addr %s159, 4
      %s161 = scalar_lea.vmem %s3, %s160
      %s162 = smul.u32 64, %s14
      %p163 = scmp.lt.s32.totalorder %s162, 127
      %s164 = scalar_select %p163, %s162, 127
      %s165 = smul.addr %s164, 4
      %s166 = scalar_lea.vmem %s0, %s165
      %s167 = smul.u32 64, %s14
      %s168 = smul.u32 64, %s14
      %p169 = scmp.lt.s32.totalorder %s168, 127
      %s170 = scalar_select %p169, %s168, 127
      %s171 = smul.addr %s170, 4
      %s172 = scalar_lea.vmem %s3, %s171
      %s173 = smul.u32 64, %s14
      %v175 = vld [vmem:[%s166] sm:$0xf]
      %v176 = vld [vmem:[%s166 + $0x4] sm:$0xf]
      %v177 = vld [vmem:[%s166 + $0x8] sm:$0xf]
      %v178 = vld [vmem:[%s166 + $0xc] sm:$0xf]
      %v179 = vld [vmem:[%s166 + $0x10] sm:$0xf]
      %v180 = vld [vmem:[%s166 + $0x14] sm:$0xf]
      %v181 = vld [vmem:[%s166 + $0x18] sm:$0xf]
      %v182 = vld [vmem:[%s166 + $0x1c] sm:$0xf]
      %v183 = vld [vmem:[%s166 + $0x20] sm:$0xf]
      %v184 = vld [vmem:[%s166 + $0x24] sm:$0xf]
      %v185 = vld [vmem:[%s166 + $0x28] sm:$0xf]
      %v186 = vld [vmem:[%s166 + $0x2c] sm:$0xf]
      %v187 = vld [vmem:[%s166 + $0x30] sm:$0xf]
      %v188 = vld [vmem:[%s166 + $0x34] sm:$0xf]
      %v189 = vld [vmem:[%s166 + $0x38] sm:$0xf]
      %v190 = vld [vmem:[%s166 + $0x3c] sm:$0xf]
      %v191 = vld [vmem:[%s166 + $0x40] sm:$0xf]
      %v192 = vld [vmem:[%s166 + $0x44] sm:$0xf]
      %v193 = vld [vmem:[%s166 + $0x48] sm:$0xf]
      %v194 = vld [vmem:[%s166 + $0x4c] sm:$0xf]
      %v195 = vld [vmem:[%s166 + $0x50] sm:$0xf]
      %v196 = vld [vmem:[%s166 + $0x54] sm:$0xf]
      %v197 = vld [vmem:[%s166 + $0x58] sm:$0xf]
      %v198 = vld [vmem:[%s166 + $0x5c] sm:$0xf]
      %v199 = vld [vmem:[%s166 + $0x60] sm:$0xf]
      %v200 = vld [vmem:[%s166 + $0x64] sm:$0xf]
      %v201 = vld [vmem:[%s166 + $0x68] sm:$0xf]
      %v202 = vld [vmem:[%s166 + $0x6c] sm:$0xf]
      %v203 = vld [vmem:[%s166 + $0x70] sm:$0xf]
      %v204 = vld [vmem:[%s166 + $0x74] sm:$0xf]
      %v205 = vld [vmem:[%s166 + $0x78] sm:$0xf]
      %v206 = vld [vmem:[%s166 + $0x7c] sm:$0xf]
      %v207 = vld [vmem:[%s166 + $0x80] sm:$0xf]
      %v208 = vld [vmem:[%s166 + $0x84] sm:$0xf]
      %v209 = vld [vmem:[%s166 + $0x88] sm:$0xf]
      %v210 = vld [vmem:[%s166 + $0x8c] sm:$0xf]
      %v211 = vld [vmem:[%s166 + $0x90] sm:$0xf]
      %v212 = vld [vmem:[%s166 + $0x94] sm:$0xf]
      %v213 = vld [vmem:[%s166 + $0x98] sm:$0xf]
      %v214 = vld [vmem:[%s166 + $0x9c] sm:$0xf]
      %v215 = vld [vmem:[%s166 + $0xa0] sm:$0xf]
      %v216 = vld [vmem:[%s166 + $0xa4] sm:$0xf]
      %v217 = vld [vmem:[%s166 + $0xa8] sm:$0xf]
      %v218 = vld [vmem:[%s166 + $0xac] sm:$0xf]
      %v219 = vld [vmem:[%s166 + $0xb0] sm:$0xf]
      %v220 = vld [vmem:[%s166 + $0xb4] sm:$0xf]
      %v221 = vld [vmem:[%s166 + $0xb8] sm:$0xf]
      %v222 = vld [vmem:[%s166 + $0xbc] sm:$0xf]
      %v223 = vld [vmem:[%s166 + $0xc0] sm:$0xf]
      %v224 = vld [vmem:[%s166 + $0xc4] sm:$0xf]
      %v225 = vld [vmem:[%s166 + $0xc8] sm:$0xf]
      %v226 = vld [vmem:[%s166 + $0xcc] sm:$0xf]
      %v227 = vld [vmem:[%s166 + $0xd0] sm:$0xf]
      %v228 = vld [vmem:[%s166 + $0xd4] sm:$0xf]
      %v229 = vld [vmem:[%s166 + $0xd8] sm:$0xf]
      %v230 = vld [vmem:[%s166 + $0xdc] sm:$0xf]
      %v231 = vld [vmem:[%s166 + $0xe0] sm:$0xf]
      %v232 = vld [vmem:[%s166 + $0xe4] sm:$0xf]
      %v233 = vld [vmem:[%s166 + $0xe8] sm:$0xf]
      %v234 = vld [vmem:[%s166 + $0xec] sm:$0xf]
      %v235 = vld [vmem:[%s166 + $0xf0] sm:$0xf]
      %v236 = vld [vmem:[%s166 + $0xf4] sm:$0xf]
      %v237 = vld [vmem:[%s166 + $0xf8] sm:$0xf]
      %v238 = vld [vmem:[%s166 + $0xfc] sm:$0xf]
      %v239 = vld [vmem:[%s1] sm:$0xf]
      %v240 = vld [vmem:[%s1 + $0x4] sm:$0xf]
      %v241 = vld [vmem:[%s1 + $0x8] sm:$0xf]
      %v242 = vld [vmem:[%s1 + $0xc] sm:$0xf]
      %v243 = vld [vmem:[%s1 + $0x10] sm:$0xf]
      %v244 = vld [vmem:[%s1 + $0x14] sm:$0xf]
      %v245 = vld [vmem:[%s2] sm:$0x1]
      %v247 = vlaneseq
      %v248 = vshrl.u32 %v247, 7
      %v249 = vsub.s32 0, %v248
      %v250 = vrot.slane %v245, %v249
      %v316 = vunpack.c.l.b16 %v175
      %v317 = vunpack.c.l.b16 %v176
      %v318 = vunpack.c.l.b16 %v177
      %v319 = vunpack.c.l.b16 %v178
      %v320 = vunpack.c.l.b16 %v179
      %v321 = vunpack.c.l.b16 %v180
      %v322 = vunpack.c.l.b16 %v181
      %v323 = vunpack.c.l.b16 %v182
      %v324 = vunpack.c.l.b16 %v183
      %v325 = vunpack.c.l.b16 %v184
      %v326 = vunpack.c.l.b16 %v185
      %v327 = vunpack.c.l.b16 %v186
      %v328 = vunpack.c.l.b16 %v187
      %v329 = vunpack.c.l.b16 %v188
      %v330 = vunpack.c.l.b16 %v189
      %v331 = vunpack.c.l.b16 %v190
      %v332 = vunpack.c.l.b16 %v191
      %v333 = vunpack.c.l.b16 %v192
      %v334 = vunpack.c.l.b16 %v193
      %v335 = vunpack.c.l.b16 %v194
      %v336 = vunpack.c.l.b16 %v195
      %v337 = vunpack.c.l.b16 %v196
      %v338 = vunpack.c.l.b16 %v197
      %v339 = vunpack.c.l.b16 %v198
      %v340 = vunpack.c.l.b16 %v199
      %v341 = vunpack.c.l.b16 %v200
      %v342 = vunpack.c.l.b16 %v201
      %v343 = vunpack.c.l.b16 %v202
      %v344 = vunpack.c.l.b16 %v203
      %v345 = vunpack.c.l.b16 %v204
      %v346 = vunpack.c.l.b16 %v205
      %v347 = vunpack.c.l.b16 %v206
      %v348 = vunpack.c.l.b16 %v207
      %v349 = vunpack.c.l.b16 %v208
      %v350 = vunpack.c.l.b16 %v209
      %v351 = vunpack.c.l.b16 %v210
      %v352 = vunpack.c.l.b16 %v211
      %v353 = vunpack.c.l.b16 %v212
      %v354 = vunpack.c.l.b16 %v213
      %v355 = vunpack.c.l.b16 %v214
      %v356 = vunpack.c.l.b16 %v215
      %v357 = vunpack.c.l.b16 %v216
      %v358 = vunpack.c.l.b16 %v217
      %v359 = vunpack.c.l.b16 %v218
      %v360 = vunpack.c.l.b16 %v219
      %v361 = vunpack.c.l.b16 %v220
      %v362 = vunpack.c.l.b16 %v221
      %v363 = vunpack.c.l.b16 %v222
      %v364 = vunpack.c.l.b16 %v223
      %v365 = vunpack.c.l.b16 %v224
      %v366 = vunpack.c.l.b16 %v225
      %v367 = vunpack.c.l.b16 %v226
      %v368 = vunpack.c.l.b16 %v227
      %v369 = vunpack.c.l.b16 %v228
      %v370 = vunpack.c.l.b16 %v229
      %v371 = vunpack.c.l.b16 %v230
      %v372 = vunpack.c.l.b16 %v231
      %v373 = vunpack.c.l.b16 %v232
      %v374 = vunpack.c.l.b16 %v233
      %v375 = vunpack.c.l.b16 %v234
      %v376 = vunpack.c.l.b16 %v235
      %v377 = vunpack.c.l.b16 %v236
      %v378 = vunpack.c.l.b16 %v237
      %v379 = vunpack.c.l.b16 %v238
      %v380 = vpack.c.b16 %v317, %v316
      %v381 = vpack.c.b16 %v319, %v318
      %v382 = vpack.c.b16 %v321, %v320
      %v383 = vpack.c.b16 %v323, %v322
      %v384 = vpack.c.b16 %v325, %v324
      %v385 = vpack.c.b16 %v327, %v326
      %v386 = vpack.c.b16 %v329, %v328
      %v387 = vpack.c.b16 %v331, %v330
      %v388 = vpack.c.b16 %v333, %v332
      %v389 = vpack.c.b16 %v335, %v334
      %v390 = vpack.c.b16 %v337, %v336
      %v391 = vpack.c.b16 %v339, %v338
      %v392 = vpack.c.b16 %v341, %v340
      %v393 = vpack.c.b16 %v343, %v342
      %v394 = vpack.c.b16 %v345, %v344
      %v395 = vpack.c.b16 %v347, %v346
      %v396 = vpack.c.b16 %v349, %v348
      %v397 = vpack.c.b16 %v351, %v350
      %v398 = vpack.c.b16 %v353, %v352
      %v399 = vpack.c.b16 %v355, %v354
      %v400 = vpack.c.b16 %v357, %v356
      %v401 = vpack.c.b16 %v359, %v358
      %v402 = vpack.c.b16 %v361, %v360
      %v403 = vpack.c.b16 %v363, %v362
      %v404 = vpack.c.b16 %v365, %v364
      %v405 = vpack.c.b16 %v367, %v366
      %v406 = vpack.c.b16 %v369, %v368
      %v407 = vpack.c.b16 %v371, %v370
      %v408 = vpack.c.b16 %v373, %v372
      %v409 = vpack.c.b16 %v375, %v374
      %v410 = vpack.c.b16 %v377, %v376
      %v411 = vpack.c.b16 %v379, %v378
      %v418 = vunpack.c.l.b16 %v239
      %v419 = vunpack.c.l.b16 %v240
      %v420 = vunpack.c.l.b16 %v241
      %v421 = vunpack.c.l.b16 %v242
      %v422 = vunpack.c.l.b16 %v243
      %v423 = vunpack.c.l.b16 %v244
      %v424 = vpack.c.b16 %v419, %v418
      %v425 = vpack.c.b16 %v421, %v420
      %v426 = vpack.c.b16 %v423, %v422
      %vm430 = vcmask 392192
      %v432 = vsel %vm430, %v380, 0
      %v435 = vsel %vm430, %v381, 0
      %v438 = vsel %vm430, %v382, 0
      %v441 = vsel %vm430, %v383, 0
      %v444 = vsel %vm430, %v384, 0
      %v447 = vsel %vm430, %v385, 0
      %v450 = vsel %vm430, %v386, 0
      %v453 = vsel %vm430, %v387, 0
      %v456 = vsel %vm430, %v388, 0
      %v459 = vsel %vm430, %v389, 0
      %v462 = vsel %vm430, %v390, 0
      %v465 = vsel %vm430, %v391, 0
      %v468 = vsel %vm430, %v392, 0
      %v471 = vsel %vm430, %v393, 0
      %v474 = vsel %vm430, %v394, 0
      %v477 = vsel %vm430, %v395, 0
      %v480 = vsel %vm430, %v396, 0
      %v483 = vsel %vm430, %v397, 0
      %v486 = vsel %vm430, %v398, 0
      %v489 = vsel %vm430, %v399, 0
      %v492 = vsel %vm430, %v400, 0
      %v495 = vsel %vm430, %v401, 0
      %v498 = vsel %vm430, %v402, 0
      %v501 = vsel %vm430, %v403, 0
      %v504 = vsel %vm430, %v404, 0
      %v507 = vsel %vm430, %v405, 0
      %v510 = vsel %vm430, %v406, 0
      %v513 = vsel %vm430, %v407, 0
      %v516 = vsel %vm430, %v408, 0
      %v519 = vsel %vm430, %v409, 0
      %v522 = vsel %vm430, %v410, 0
      %v525 = vsel %vm430, %v411, 0
      %527 = vmatprep.subr.bf16.mxu0 0
      %528 = vmatpush1.bf16.msra.mxu0 %v424
      %529 = vmatprep.subr.bf16.mxu0 0
      %530 = vmatpush1.bf16.msra.mxu0 %v425
      %531 = vmatprep.subr.bf16.mxu0 0
      %532 = vmatpush1.bf16.msra.mxu0 %v426
      %533 = vmatprep.subr.bf16.mxu0 0
      %534 = vmatpush1.bf16.msra.mxu0 0
      %535 = vmatprep.subr.bf16.mxu0 0
      %536 = vmatpush1.bf16.msra.mxu0 0
      %537 = vmatprep.subr.bf16.mxu0 0
      %538 = vmatpush1.bf16.msra.mxu0 0
      %539 = vmatprep.subr.bf16.mxu0 0
      %540 = vmatpush1.bf16.msra.mxu0 0
      %541 = vmatprep.subr.bf16.mxu0 0
      %542 = vmatpush1.bf16.msra.mxu0 0
      %543 = vmatprep.subr.bf16.mxu0 0
      %544 = vmatpush1.bf16.msra.mxu0 0
      %545 = vmatprep.subr.bf16.mxu0 0
      %546 = vmatpush1.bf16.msra.mxu0 0
      %547 = vmatprep.subr.bf16.mxu0 0
      %548 = vmatpush1.bf16.msra.mxu0 0
      %549 = vmatprep.subr.bf16.mxu0 0
      %550 = vmatpush1.bf16.msra.mxu0 0
      %551 = vmatprep.subr.bf16.mxu0 0
      %552 = vmatpush1.bf16.msra.mxu0 0
      %553 = vmatprep.subr.bf16.mxu0 0
      %554 = vmatpush1.bf16.msra.mxu0 0
      %555 = vmatprep.subr.bf16.mxu0 0
      %556 = vmatpush1.bf16.msra.mxu0 0
      %557 = vmatprep.subr.bf16.mxu0 0
      %558 = vmatpush1.bf16.msra.mxu0 0
      %559 = vmatprep.mubr.bf16.mxu0 0
      %560 = vmatmul.mubr.bf16.gmra.mrb[0].mxu0 %v432
      %v561 = vpop.f32.mrb[0].mxu0
      %v562 = vadd.f32 %v250, %v561
      %v563 = vpop.f32.mrb[0].mxu0
      %v564 = vpop.f32.mrb[0].mxu0
      %v565 = vadd.f32 %v250, %v564
      %v566 = vpop.f32.mrb[0].mxu0
      %567 = vmatprep.mubr.bf16.mxu0 0
      %568 = vmatmul.mubr.bf16.gmra.mrb[0].mxu0 %v435
      %v569 = vpop.f32.mrb[0].mxu0
      %v570 = vadd.f32 %v250, %v569
      %v571 = vpop.f32.mrb[0].mxu0
      %v572 = vpop.f32.mrb[0].mxu0
      %v573 = vadd.f32 %v250, %v572
      %v574 = vpop.f32.mrb[0].mxu0
      %575 = vmatprep.mubr.bf16.mxu0 0
      %576 = vmatmul.mubr.bf16.gmra.mrb[0].mxu0 %v438
      %v577 = vpop.f32.mrb[0].mxu0
      %v578 = vadd.f32 %v250, %v577
      %v579 = vpop.f32.mrb[0].mxu0
      %v580 = vpop.f32.mrb[0].mxu0
      %v581 = vadd.f32 %v250, %v580
      %v582 = vpop.f32.mrb[0].mxu0
      %583 = vmatprep.mubr.bf16.mxu0 0
      %584 = vmatmul.mubr.bf16.gmra.mrb[0].mxu0 %v441
      %v585 = vpop.f32.mrb[0].mxu0
      %v586 = vadd.f32 %v250, %v585
      %v587 = vpop.f32.mrb[0].mxu0
      %v588 = vpop.f32.mrb[0].mxu0
      %v589 = vadd.f32 %v250, %v588
      %v590 = vpop.f32.mrb[0].mxu0
      %591 = vmatprep.mubr.bf16.mxu0 0
      %592 = vmatmul.mubr.bf16.gmra.mrb[0].mxu0 %v444
      %v593 = vpop.f32.mrb[0].mxu0
      %v594 = vadd.f32 %v250, %v593
      %v595 = vpop.f32.mrb[0].mxu0
      %v596 = vpop.f32.mrb[0].mxu0
      %v597 = vadd.f32 %v250, %v596
      %v598 = vpop.f32.mrb[0].mxu0
      %599 = vmatprep.mubr.bf16.mxu0 0
      %600 = vmatmul.mubr.bf16.gmra.mrb[0].mxu0 %v447
      %v601 = vpop.f32.mrb[0].mxu0
      %v602 = vadd.f32 %v250, %v601
      %v603 = vpop.f32.mrb[0].mxu0
      %v604 = vpop.f32.mrb[0].mxu0
      %v605 = vadd.f32 %v250, %v604
      %v606 = vpop.f32.mrb[0].mxu0
      %607 = vmatprep.mubr.bf16.mxu0 0
      %608 = vmatmul.mubr.bf16.gmra.mrb[0].mxu0 %v450
      %v609 = vpop.f32.mrb[0].mxu0
      %v610 = vadd.f32 %v250, %v609
      %v611 = vpop.f32.mrb[0].mxu0
      %v612 = vpop.f32.mrb[0].mxu0
      %v613 = vadd.f32 %v250, %v612
      %v614 = vpop.f32.mrb[0].mxu0
      %615 = vmatprep.mubr.bf16.mxu0 0
      %616 = vmatmul.mubr.bf16.gmra.mrb[0].mxu0 %v453
      %v617 = vpop.f32.mrb[0].mxu0
      %v618 = vadd.f32 %v250, %v617
      %v619 = vpop.f32.mrb[0].mxu0
      %v620 = vpop.f32.mrb[0].mxu0
      %v621 = vadd.f32 %v250, %v620
      %v622 = vpop.f32.mrb[0].mxu0
      %623 = vmatprep.mubr.bf16.mxu0 0
      %624 = vmatmul.mubr.bf16.gmra.mrb[0].mxu0 %v456
      %v625 = vpop.f32.mrb[0].mxu0
      %v626 = vadd.f32 %v250, %v625
      %v627 = vpop.f32.mrb[0].mxu0
      %v628 = vpop.f32.mrb[0].mxu0
      %v629 = vadd.f32 %v250, %v628
      %v630 = vpop.f32.mrb[0].mxu0
      %631 = vmatprep.mubr.bf16.mxu0 0
      %632 = vmatmul.mubr.bf16.gmra.mrb[0].mxu0 %v459
      %v633 = vpop.f32.mrb[0].mxu0
      %v634 = vadd.f32 %v250, %v633
      %v635 = vpop.f32.mrb[0].mxu0
      %v636 = vpop.f32.mrb[0].mxu0
      %v637 = vadd.f32 %v250, %v636
      %v638 = vpop.f32.mrb[0].mxu0
      %639 = vmatprep.mubr.bf16.mxu0 0
      %640 = vmatmul.mubr.bf16.gmra.mrb[0].mxu0 %v462
      %v641 = vpop.f32.mrb[0].mxu0
      %v642 = vadd.f32 %v250, %v641
      %v643 = vpop.f32.mrb[0].mxu0
      %v644 = vpop.f32.mrb[0].mxu0
      %v645 = vadd.f32 %v250, %v644
      %v646 = vpop.f32.mrb[0].mxu0
      %647 = vmatprep.mubr.bf16.mxu0 0
      %648 = vmatmul.mubr.bf16.gmra.mrb[0].mxu0 %v465
      %v649 = vpop.f32.mrb[0].mxu0
      %v650 = vadd.f32 %v250, %v649
      %v651 = vpop.f32.mrb[0].mxu0
      %v652 = vpop.f32.mrb[0].mxu0
      %v653 = vadd.f32 %v250, %v652
      %v654 = vpop.f32.mrb[0].mxu0
      %655 = vmatprep.mubr.bf16.mxu0 0
      %656 = vmatmul.mubr.bf16.gmra.mrb[0].mxu0 %v468
      %v657 = vpop.f32.mrb[0].mxu0
      %v658 = vadd.f32 %v250, %v657
      %v659 = vpop.f32.mrb[0].mxu0
      %v660 = vpop.f32.mrb[0].mxu0
      %v661 = vadd.f32 %v250, %v660
      %v662 = vpop.f32.mrb[0].mxu0
      %663 = vmatprep.mubr.bf16.mxu0 0
      %664 = vmatmul.mubr.bf16.gmra.mrb[0].mxu0 %v471
      %v665 = vpop.f32.mrb[0].mxu0
      %v666 = vadd.f32 %v250, %v665
      %v667 = vpop.f32.mrb[0].mxu0
      %v668 = vpop.f32.mrb[0].mxu0
      %v669 = vadd.f32 %v250, %v668
      %v670 = vpop.f32.mrb[0].mxu0
      %671 = vmatprep.mubr.bf16.mxu0 0
      %672 = vmatmul.mubr.bf16.gmra.mrb[0].mxu0 %v474
      %v673 = vpop.f32.mrb[0].mxu0
      %v674 = vadd.f32 %v250, %v673
      %v675 = vpop.f32.mrb[0].mxu0
      %v676 = vpop.f32.mrb[0].mxu0
      %v677 = vadd.f32 %v250, %v676
      %v678 = vpop.f32.mrb[0].mxu0
      %679 = vmatprep.mubr.bf16.mxu0 0
      %680 = vmatmul.mubr.bf16.gmra.mrb[0].mxu0 %v477
      %v681 = vpop.f32.mrb[0].mxu0
      %v682 = vadd.f32 %v250, %v681
      %v683 = vpop.f32.mrb[0].mxu0
      %v684 = vpop.f32.mrb[0].mxu0
      %v685 = vadd.f32 %v250, %v684
      %v686 = vpop.f32.mrb[0].mxu0
      %687 = vmatprep.mubr.bf16.mxu0 0
      %688 = vmatmul.mubr.bf16.gmra.mrb[0].mxu0 %v480
      %v689 = vpop.f32.mrb[0].mxu0
      %v690 = vadd.f32 %v250, %v689
      %v691 = vpop.f32.mrb[0].mxu0
      %v692 = vpop.f32.mrb[0].mxu0
      %v693 = vadd.f32 %v250, %v692
      %v694 = vpop.f32.mrb[0].mxu0
      %695 = vmatprep.mubr.bf16.mxu0 0
      %696 = vmatmul.mubr.bf16.gmra.mrb[0].mxu0 %v483
      %v697 = vpop.f32.mrb[0].mxu0
      %v698 = vadd.f32 %v250, %v697
      %v699 = vpop.f32.mrb[0].mxu0
      %v700 = vpop.f32.mrb[0].mxu0
      %v701 = vadd.f32 %v250, %v700
      %v702 = vpop.f32.mrb[0].mxu0
      %703 = vmatprep.mubr.bf16.mxu0 0
      %704 = vmatmul.mubr.bf16.gmra.mrb[0].mxu0 %v486
      %v705 = vpop.f32.mrb[0].mxu0
      %v706 = vadd.f32 %v250, %v705
      %v707 = vpop.f32.mrb[0].mxu0
      %v708 = vpop.f32.mrb[0].mxu0
      %v709 = vadd.f32 %v250, %v708
      %v710 = vpop.f32.mrb[0].mxu0
      %711 = vmatprep.mubr.bf16.mxu0 0
      %712 = vmatmul.mubr.bf16.gmra.mrb[0].mxu0 %v489
      %v713 = vpop.f32.mrb[0].mxu0
      %v714 = vadd.f32 %v250, %v713
      %v715 = vpop.f32.mrb[0].mxu0
      %v716 = vpop.f32.mrb[0].mxu0
      %v717 = vadd.f32 %v250, %v716
      %v718 = vpop.f32.mrb[0].mxu0
      %719 = vmatprep.mubr.bf16.mxu0 0
      %720 = vmatmul.mubr.bf16.gmra.mrb[0].mxu0 %v492
      %v721 = vpop.f32.mrb[0].mxu0
      %v722 = vadd.f32 %v250, %v721
      %v723 = vpop.f32.mrb[0].mxu0
      %v724 = vpop.f32.mrb[0].mxu0
      %v725 = vadd.f32 %v250, %v724
      %v726 = vpop.f32.mrb[0].mxu0
      %727 = vmatprep.mubr.bf16.mxu0 0
      %728 = vmatmul.mubr.bf16.gmra.mrb[0].mxu0 %v495
      %v729 = vpop.f32.mrb[0].mxu0
      %v730 = vadd.f32 %v250, %v729
      %v731 = vpop.f32.mrb[0].mxu0
      %v732 = vpop.f32.mrb[0].mxu0
      %v733 = vadd.f32 %v250, %v732
      %v734 = vpop.f32.mrb[0].mxu0
      %735 = vmatprep.mubr.bf16.mxu0 0
      %736 = vmatmul.mubr.bf16.gmra.mrb[0].mxu0 %v498
      %v737 = vpop.f32.mrb[0].mxu0
      %v738 = vadd.f32 %v250, %v737
      %v739 = vpop.f32.mrb[0].mxu0
      %v740 = vpop.f32.mrb[0].mxu0
      %v741 = vadd.f32 %v250, %v740
      %v742 = vpop.f32.mrb[0].mxu0
      %743 = vmatprep.mubr.bf16.mxu0 0
      %744 = vmatmul.mubr.bf16.gmra.mrb[0].mxu0 %v501
      %v745 = vpop.f32.mrb[0].mxu0
      %v746 = vadd.f32 %v250, %v745
      %v747 = vpop.f32.mrb[0].mxu0
      %v748 = vpop.f32.mrb[0].mxu0
      %v749 = vadd.f32 %v250, %v748
      %v750 = vpop.f32.mrb[0].mxu0
      %751 = vmatprep.mubr.bf16.mxu0 0
      %752 = vmatmul.mubr.bf16.gmra.mrb[0].mxu0 %v504
      %v753 = vpop.f32.mrb[0].mxu0
      %v754 = vadd.f32 %v250, %v753
      %v755 = vpop.f32.mrb[0].mxu0
      %v756 = vpop.f32.mrb[0].mxu0
      %v757 = vadd.f32 %v250, %v756
      %v758 = vpop.f32.mrb[0].mxu0
      %759 = vmatprep.mubr.bf16.mxu0 0
      %760 = vmatmul.mubr.bf16.gmra.mrb[0].mxu0 %v507
      %v761 = vpop.f32.mrb[0].mxu0
      %v762 = vadd.f32 %v250, %v761
      %v763 = vpop.f32.mrb[0].mxu0
      %v764 = vpop.f32.mrb[0].mxu0
      %v765 = vadd.f32 %v250, %v764
      %v766 = vpop.f32.mrb[0].mxu0
      %767 = vmatprep.mubr.bf16.mxu0 0
      %768 = vmatmul.mubr.bf16.gmra.mrb[0].mxu0 %v510
      %v769 = vpop.f32.mrb[0].mxu0
      %v770 = vadd.f32 %v250, %v769
      %v771 = vpop.f32.mrb[0].mxu0
      %v772 = vpop.f32.mrb[0].mxu0
      %v773 = vadd.f32 %v250, %v772
      %v774 = vpop.f32.mrb[0].mxu0
      %775 = vmatprep.mubr.bf16.mxu0 0
      %776 = vmatmul.mubr.bf16.gmra.mrb[0].mxu0 %v513
      %v777 = vpop.f32.mrb[0].mxu0
      %v778 = vadd.f32 %v250, %v777
      %v779 = vpop.f32.mrb[0].mxu0
      %v780 = vpop.f32.mrb[0].mxu0
      %v781 = vadd.f32 %v250, %v780
      %v782 = vpop.f32.mrb[0].mxu0
      %783 = vmatprep.mubr.bf16.mxu0 0
      %784 = vmatmul.mubr.bf16.gmra.mrb[0].mxu0 %v516
      %v785 = vpop.f32.mrb[0].mxu0
      %v786 = vadd.f32 %v250, %v785
      %v787 = vpop.f32.mrb[0].mxu0
      %v788 = vpop.f32.mrb[0].mxu0
      %v789 = vadd.f32 %v250, %v788
      %v790 = vpop.f32.mrb[0].mxu0
      %791 = vmatprep.mubr.bf16.mxu0 0
      %792 = vmatmul.mubr.bf16.gmra.mrb[0].mxu0 %v519
      %v793 = vpop.f32.mrb[0].mxu0
      %v794 = vadd.f32 %v250, %v793
      %v795 = vpop.f32.mrb[0].mxu0
      %v796 = vpop.f32.mrb[0].mxu0
      %v797 = vadd.f32 %v250, %v796
      %v798 = vpop.f32.mrb[0].mxu0
      %799 = vmatprep.mubr.bf16.mxu0 0
      %800 = vmatmul.mubr.bf16.gmra.mrb[0].mxu0 %v522
      %v801 = vpop.f32.mrb[0].mxu0
      %v802 = vadd.f32 %v250, %v801
      %v803 = vpop.f32.mrb[0].mxu0
      %v804 = vpop.f32.mrb[0].mxu0
      %v805 = vadd.f32 %v250, %v804
      %v806 = vpop.f32.mrb[0].mxu0
      %807 = vmatprep.mubr.bf16.mxu0 0
      %808 = vmatmul.mubr.bf16.gmra.mrb[0].mxu0 %v525
      %v809 = vpop.f32.mrb[0].mxu0
      %v810 = vadd.f32 %v250, %v809
      %v811 = vpop.f32.mrb[0].mxu0
      %v812 = vpop.f32.mrb[0].mxu0
      %v813 = vadd.f32 %v250, %v812
      %v814 = vpop.f32.mrb[0].mxu0
      %815 = vdwg.mxu0
      %v816 = vmax.f32 %v562, 0.0
      %v817 = vmax.f32 %v565, 0.0
      %v818 = vmax.f32 %v570, 0.0
      %v819 = vmax.f32 %v573, 0.0
      %v820 = vmax.f32 %v578, 0.0
      %v821 = vmax.f32 %v581, 0.0
      %v822 = vmax.f32 %v586, 0.0
      %v823 = vmax.f32 %v589, 0.0
      %v824 = vmax.f32 %v594, 0.0
      %v825 = vmax.f32 %v597, 0.0
      %v826 = vmax.f32 %v602, 0.0
      %v827 = vmax.f32 %v605, 0.0
      %v828 = vmax.f32 %v610, 0.0
      %v829 = vmax.f32 %v613, 0.0
      %v830 = vmax.f32 %v618, 0.0
      %v831 = vmax.f32 %v621, 0.0
      %v832 = vmax.f32 %v626, 0.0
      %v833 = vmax.f32 %v629, 0.0
      %v834 = vmax.f32 %v634, 0.0
      %v835 = vmax.f32 %v637, 0.0
      %v836 = vmax.f32 %v642, 0.0
      %v837 = vmax.f32 %v645, 0.0
      %v838 = vmax.f32 %v650, 0.0
      %v839 = vmax.f32 %v653, 0.0
      %v840 = vmax.f32 %v658, 0.0
      %v841 = vmax.f32 %v661, 0.0
      %v842 = vmax.f32 %v666, 0.0
      %v843 = vmax.f32 %v669, 0.0
      %v844 = vmax.f32 %v674, 0.0
      %v845 = vmax.f32 %v677, 0.0
      %v846 = vmax.f32 %v682, 0.0
      %v847 = vmax.f32 %v685, 0.0
      %v848 = vmax.f32 %v690, 0.0
      %v849 = vmax.f32 %v693, 0.0
      %v850 = vmax.f32 %v698, 0.0
      %v851 = vmax.f32 %v701, 0.0
      %v852 = vmax.f32 %v706, 0.0
      %v853 = vmax.f32 %v709, 0.0
      %v854 = vmax.f32 %v714, 0.0
      %v855 = vmax.f32 %v717, 0.0
      %v856 = vmax.f32 %v722, 0.0
      %v857 = vmax.f32 %v725, 0.0
      %v858 = vmax.f32 %v730, 0.0
      %v859 = vmax.f32 %v733, 0.0
      %v860 = vmax.f32 %v738, 0.0
      %v861 = vmax.f32 %v741, 0.0
      %v862 = vmax.f32 %v746, 0.0
      %v863 = vmax.f32 %v749, 0.0
      %v864 = vmax.f32 %v754, 0.0
      %v865 = vmax.f32 %v757, 0.0
      %v866 = vmax.f32 %v762, 0.0
      %v867 = vmax.f32 %v765, 0.0
      %v868 = vmax.f32 %v770, 0.0
      %v869 = vmax.f32 %v773, 0.0
      %v870 = vmax.f32 %v778, 0.0
      %v871 = vmax.f32 %v781, 0.0
      %v872 = vmax.f32 %v786, 0.0
      %v873 = vmax.f32 %v789, 0.0
      %v874 = vmax.f32 %v794, 0.0
      %v875 = vmax.f32 %v797, 0.0
      %v876 = vmax.f32 %v802, 0.0
      %v877 = vmax.f32 %v805, 0.0
      %v878 = vmax.f32 %v810, 0.0
      %v879 = vmax.f32 %v813, 0.0
      %v880 = vpack.c.bf16 %v817, %v816
      %v881 = vpack.c.bf16 %v819, %v818
      %v882 = vpack.c.bf16 %v821, %v820
      %v883 = vpack.c.bf16 %v823, %v822
      %v884 = vpack.c.bf16 %v825, %v824
      %v885 = vpack.c.bf16 %v827, %v826
      %v886 = vpack.c.bf16 %v829, %v828
      %v887 = vpack.c.bf16 %v831, %v830
      %v888 = vpack.c.bf16 %v833, %v832
      %v889 = vpack.c.bf16 %v835, %v834
      %v890 = vpack.c.bf16 %v837, %v836
      %v891 = vpack.c.bf16 %v839, %v838
      %v892 = vpack.c.bf16 %v841, %v840
      %v893 = vpack.c.bf16 %v843, %v842
      %v894 = vpack.c.bf16 %v845, %v844
      %v895 = vpack.c.bf16 %v847, %v846
      %v896 = vpack.c.bf16 %v849, %v848
      %v897 = vpack.c.bf16 %v851, %v850
      %v898 = vpack.c.bf16 %v853, %v852
      %v899 = vpack.c.bf16 %v855, %v854
      %v900 = vpack.c.bf16 %v857, %v856
      %v901 = vpack.c.bf16 %v859, %v858
      %v902 = vpack.c.bf16 %v861, %v860
      %v903 = vpack.c.bf16 %v863, %v862
      %v904 = vpack.c.bf16 %v865, %v864
      %v905 = vpack.c.bf16 %v867, %v866
      %v906 = vpack.c.bf16 %v869, %v868
      %v907 = vpack.c.bf16 %v871, %v870
      %v908 = vpack.c.bf16 %v873, %v872
      %v909 = vpack.c.bf16 %v875, %v874
      %v910 = vpack.c.bf16 %v877, %v876
      %v911 = vpack.c.bf16 %v879, %v878
      %v944 = vunpack.c.l.b16 %v880
      %v945 = vunpack.c.h.b16 %v880
      %v946 = vunpack.c.l.b16 %v881
      %v947 = vunpack.c.h.b16 %v881
      %v948 = vunpack.c.l.b16 %v882
      %v949 = vunpack.c.h.b16 %v882
      %v950 = vunpack.c.l.b16 %v883
      %v951 = vunpack.c.h.b16 %v883
      %v952 = vunpack.c.l.b16 %v884
      %v953 = vunpack.c.h.b16 %v884
      %v954 = vunpack.c.l.b16 %v885
      %v955 = vunpack.c.h.b16 %v885
      %v956 = vunpack.c.l.b16 %v886
      %v957 = vunpack.c.h.b16 %v886
      %v958 = vunpack.c.l.b16 %v887
      %v959 = vunpack.c.h.b16 %v887
      %v960 = vunpack.c.l.b16 %v888
      %v961 = vunpack.c.h.b16 %v888
      %v962 = vunpack.c.l.b16 %v889
      %v963 = vunpack.c.h.b16 %v889
      %v964 = vunpack.c.l.b16 %v890
      %v965 = vunpack.c.h.b16 %v890
      %v966 = vunpack.c.l.b16 %v891
      %v967 = vunpack.c.h.b16 %v891
      %v968 = vunpack.c.l.b16 %v892
      %v969 = vunpack.c.h.b16 %v892
      %v970 = vunpack.c.l.b16 %v893
      %v971 = vunpack.c.h.b16 %v893
      %v972 = vunpack.c.l.b16 %v894
      %v973 = vunpack.c.h.b16 %v894
      %v974 = vunpack.c.l.b16 %v895
      %v975 = vunpack.c.h.b16 %v895
      %v976 = vunpack.c.l.b16 %v896
      %v977 = vunpack.c.h.b16 %v896
      %v978 = vunpack.c.l.b16 %v897
      %v979 = vunpack.c.h.b16 %v897
      %v980 = vunpack.c.l.b16 %v898
      %v981 = vunpack.c.h.b16 %v898
      %v982 = vunpack.c.l.b16 %v899
      %v983 = vunpack.c.h.b16 %v899
      %v984 = vunpack.c.l.b16 %v900
      %v985 = vunpack.c.h.b16 %v900
      %v986 = vunpack.c.l.b16 %v901
      %v987 = vunpack.c.h.b16 %v901
      %v988 = vunpack.c.l.b16 %v902
      %v989 = vunpack.c.h.b16 %v902
      %v990 = vunpack.c.l.b16 %v903
      %v991 = vunpack.c.h.b16 %v903
      %v992 = vunpack.c.l.b16 %v904
      %v993 = vunpack.c.h.b16 %v904
      %v994 = vunpack.c.l.b16 %v905
      %v995 = vunpack.c.h.b16 %v905
      %v996 = vunpack.c.l.b16 %v906
      %v997 = vunpack.c.h.b16 %v906
      %v998 = vunpack.c.l.b16 %v907
      %v999 = vunpack.c.h.b16 %v907
      %v1000 = vunpack.c.l.b16 %v908
      %v1001 = vunpack.c.h.b16 %v908
      %v1002 = vunpack.c.l.b16 %v909
      %v1003 = vunpack.c.h.b16 %v909
      %v1004 = vunpack.c.l.b16 %v910
      %v1005 = vunpack.c.h.b16 %v910
      %v1006 = vunpack.c.l.b16 %v911
      %v1007 = vunpack.c.h.b16 %v911
      %v1008 = vpack.c.b16 %v944, %v944
      %v1009 = vpack.c.b16 %v945, %v945
      %v1010 = vpack.c.b16 %v946, %v946
      %v1011 = vpack.c.b16 %v947, %v947
      %v1012 = vpack.c.b16 %v948, %v948
      %v1013 = vpack.c.b16 %v949, %v949
      %v1014 = vpack.c.b16 %v950, %v950
      %v1015 = vpack.c.b16 %v951, %v951
      %v1016 = vpack.c.b16 %v952, %v952
      %v1017 = vpack.c.b16 %v953, %v953
      %v1018 = vpack.c.b16 %v954, %v954
      %v1019 = vpack.c.b16 %v955, %v955
      %v1020 = vpack.c.b16 %v956, %v956
      %v1021 = vpack.c.b16 %v957, %v957
      %v1022 = vpack.c.b16 %v958, %v958
      %v1023 = vpack.c.b16 %v959, %v959
      %v1024 = vpack.c.b16 %v960, %v960
      %v1025 = vpack.c.b16 %v961, %v961
      %v1026 = vpack.c.b16 %v962, %v962
      %v1027 = vpack.c.b16 %v963, %v963
      %v1028 = vpack.c.b16 %v964, %v964
      %v1029 = vpack.c.b16 %v965, %v965
      %v1030 = vpack.c.b16 %v966, %v966
      %v1031 = vpack.c.b16 %v967, %v967
      %v1032 = vpack.c.b16 %v968, %v968
      %v1033 = vpack.c.b16 %v969, %v969
      %v1034 = vpack.c.b16 %v970, %v970
      %v1035 = vpack.c.b16 %v971, %v971
      %v1036 = vpack.c.b16 %v972, %v972
      %v1037 = vpack.c.b16 %v973, %v973
      %v1038 = vpack.c.b16 %v974, %v974
      %v1039 = vpack.c.b16 %v975, %v975
      %v1040 = vpack.c.b16 %v976, %v976
      %v1041 = vpack.c.b16 %v977, %v977
      %v1042 = vpack.c.b16 %v978, %v978
      %v1043 = vpack.c.b16 %v979, %v979
      %v1044 = vpack.c.b16 %v980, %v980
      %v1045 = vpack.c.b16 %v981, %v981
      %v1046 = vpack.c.b16 %v982, %v982
      %v1047 = vpack.c.b16 %v983, %v983
      %v1048 = vpack.c.b16 %v984, %v984
      %v1049 = vpack.c.b16 %v985, %v985
      %v1050 = vpack.c.b16 %v986, %v986
      %v1051 = vpack.c.b16 %v987, %v987
      %v1052 = vpack.c.b16 %v988, %v988
      %v1053 = vpack.c.b16 %v989, %v989
      %v1054 = vpack.c.b16 %v990, %v990
      %v1055 = vpack.c.b16 %v991, %v991
      %v1056 = vpack.c.b16 %v992, %v992
      %v1057 = vpack.c.b16 %v993, %v993
      %v1058 = vpack.c.b16 %v994, %v994
      %v1059 = vpack.c.b16 %v995, %v995
      %v1060 = vpack.c.b16 %v996, %v996
      %v1061 = vpack.c.b16 %v997, %v997
      %v1062 = vpack.c.b16 %v998, %v998
      %v1063 = vpack.c.b16 %v999, %v999
      %v1064 = vpack.c.b16 %v1000, %v1000
      %v1065 = vpack.c.b16 %v1001, %v1001
      %v1066 = vpack.c.b16 %v1002, %v1002
      %v1067 = vpack.c.b16 %v1003, %v1003
      %v1068 = vpack.c.b16 %v1004, %v1004
      %v1069 = vpack.c.b16 %v1005, %v1005
      %v1070 = vpack.c.b16 %v1006, %v1006
      %v1071 = vpack.c.b16 %v1007, %v1007
      %vm1136 = vcmask 60416
      %1137 = vst.msk [vmem:[%s172] sm:$0xf] %vm1136, %v1008
      %1138 = vst.msk [vmem:[%s172 + $0x4] sm:$0xf] %vm1136, %v1009
      %1139 = vst.msk [vmem:[%s172 + $0x8] sm:$0xf] %vm1136, %v1010
      %1140 = vst.msk [vmem:[%s172 + $0xc] sm:$0xf] %vm1136, %v1011
      %1141 = vst.msk [vmem:[%s172 + $0x10] sm:$0xf] %vm1136, %v1012
      %1142 = vst.msk [vmem:[%s172 + $0x14] sm:$0xf] %vm1136, %v1013
      %1143 = vst.msk [vmem:[%s172 + $0x18] sm:$0xf] %vm1136, %v1014
      %1144 = vst.msk [vmem:[%s172 + $0x1c] sm:$0xf] %vm1136, %v1015
      %1145 = vst.msk [vmem:[%s172 + $0x20] sm:$0xf] %vm1136, %v1016
      %1146 = vst.msk [vmem:[%s172 + $0x24] sm:$0xf] %vm1136, %v1017
      %1147 = vst.msk [vmem:[%s172 + $0x28] sm:$0xf] %vm1136, %v1018
      %1148 = vst.msk [vmem:[%s172 + $0x2c] sm:$0xf] %vm1136, %v1019
      %1149 = vst.msk [vmem:[%s172 + $0x30] sm:$0xf] %vm1136, %v1020
      %1150 = vst.msk [vmem:[%s172 + $0x34] sm:$0xf] %vm1136, %v1021
      %1151 = vst.msk [vmem:[%s172 + $0x38] sm:$0xf] %vm1136, %v1022
      %1152 = vst.msk [vmem:[%s172 + $0x3c] sm:$0xf] %vm1136, %v1023
      %1153 = vst.msk [vmem:[%s172 + $0x40] sm:$0xf] %vm1136, %v1024
      %1154 = vst.msk [vmem:[%s172 + $0x44] sm:$0xf] %vm1136, %v1025
      %1155 = vst.msk [vmem:[%s172 + $0x48] sm:$0xf] %vm1136, %v1026
      %1156 = vst.msk [vmem:[%s172 + $0x4c] sm:$0xf] %vm1136, %v1027
      %1157 = vst.msk [vmem:[%s172 + $0x50] sm:$0xf] %vm1136, %v1028
      %1158 = vst.msk [vmem:[%s172 + $0x54] sm:$0xf] %vm1136, %v1029
      %1159 = vst.msk [vmem:[%s172 + $0x58] sm:$0xf] %vm1136, %v1030
      %1160 = vst.msk [vmem:[%s172 + $0x5c] sm:$0xf] %vm1136, %v1031
      %1161 = vst.msk [vmem:[%s172 + $0x60] sm:$0xf] %vm1136, %v1032
      %1162 = vst.msk [vmem:[%s172 + $0x64] sm:$0xf] %vm1136, %v1033
      %1163 = vst.msk [vmem:[%s172 + $0x68] sm:$0xf] %vm1136, %v1034
      %1164 = vst.msk [vmem:[%s172 + $0x6c] sm:$0xf] %vm1136, %v1035
      %1165 = vst.msk [vmem:[%s172 + $0x70] sm:$0xf] %vm1136, %v1036
      %1166 = vst.msk [vmem:[%s172 + $0x74] sm:$0xf] %vm1136, %v1037
      %1167 = vst.msk [vmem:[%s172 + $0x78] sm:$0xf] %vm1136, %v1038
      %1168 = vst.msk [vmem:[%s172 + $0x7c] sm:$0xf] %vm1136, %v1039
      %1169 = vst.msk [vmem:[%s172 + $0x80] sm:$0xf] %vm1136, %v1040
      %1170 = vst.msk [vmem:[%s172 + $0x84] sm:$0xf] %vm1136, %v1041
      %1171 = vst.msk [vmem:[%s172 + $0x88] sm:$0xf] %vm1136, %v1042
      %1172 = vst.msk [vmem:[%s172 + $0x8c] sm:$0xf] %vm1136, %v1043
      %1173 = vst.msk [vmem:[%s172 + $0x90] sm:$0xf] %vm1136, %v1044
      %1174 = vst.msk [vmem:[%s172 + $0x94] sm:$0xf] %vm1136, %v1045
      %1175 = vst.msk [vmem:[%s172 + $0x98] sm:$0xf] %vm1136, %v1046
      %1176 = vst.msk [vmem:[%s172 + $0x9c] sm:$0xf] %vm1136, %v1047
      %1177 = vst.msk [vmem:[%s172 + $0xa0] sm:$0xf] %vm1136, %v1048
      %1178 = vst.msk [vmem:[%s172 + $0xa4] sm:$0xf] %vm1136, %v1049
      %1179 = vst.msk [vmem:[%s172 + $0xa8] sm:$0xf] %vm1136, %v1050
      %1180 = vst.msk [vmem:[%s172 + $0xac] sm:$0xf] %vm1136, %v1051
      %1181 = vst.msk [vmem:[%s172 + $0xb0] sm:$0xf] %vm1136, %v1052
      %1182 = vst.msk [vmem:[%s172 + $0xb4] sm:$0xf] %vm1136, %v1053
      %1183 = vst.msk [vmem:[%s172 + $0xb8] sm:$0xf] %vm1136, %v1054
      %1184 = vst.msk [vmem:[%s172 + $0xbc] sm:$0xf] %vm1136, %v1055
      %1185 = vst.msk [vmem:[%s172 + $0xc0] sm:$0xf] %vm1136, %v1056
      %1186 = vst.msk [vmem:[%s172 + $0xc4] sm:$0xf] %vm1136, %v1057
      %1187 = vst.msk [vmem:[%s172 + $0xc8] sm:$0xf] %vm1136, %v1058
      %1188 = vst.msk [vmem:[%s172 + $0xcc] sm:$0xf] %vm1136, %v1059
      %1189 = vst.msk [vmem:[%s172 + $0xd0] sm:$0xf] %vm1136, %v1060
      %1190 = vst.msk [vmem:[%s172 + $0xd4] sm:$0xf] %vm1136, %v1061
      %1191 = vst.msk [vmem:[%s172 + $0xd8] sm:$0xf] %vm1136, %v1062
      %1192 = vst.msk [vmem:[%s172 + $0xdc] sm:$0xf] %vm1136, %v1063
      %1193 = vst.msk [vmem:[%s172 + $0xe0] sm:$0xf] %vm1136, %v1064
      %1194 = vst.msk [vmem:[%s172 + $0xe4] sm:$0xf] %vm1136, %v1065
      %1195 = vst.msk [vmem:[%s172 + $0xe8] sm:$0xf] %vm1136, %v1066
      %1196 = vst.msk [vmem:[%s172 + $0xec] sm:$0xf] %vm1136, %v1067
      %1197 = vst.msk [vmem:[%s172 + $0xf0] sm:$0xf] %vm1136, %v1068
      %1198 = vst.msk [vmem:[%s172 + $0xf4] sm:$0xf] %vm1136, %v1069
      %1199 = vst.msk [vmem:[%s172 + $0xf8] sm:$0xf] %vm1136, %v1070
      %1200 = vst.msk [vmem:[%s172 + $0xfc] sm:$0xf] %vm1136, %v1071
      %s1201 = smul.u32 64, %s14
      %p1202 = scmp.lt.s32.totalorder %s1201, 127
      %s1203 = scalar_select %p1202, %s1201, 127
      %s1204 = smul.addr %s1203, 4
      %s1205 = scalar_lea.vmem %s3, %s1204
      // Predicated region
      $region33: #{tpu_custom_call.1} parent=31 // pred_check
        %p1206 = pneg %p100
      $region34: #{tpu_custom_call.1} parent=31 // pred_check_branch
        %1208 = sbr.rel (%p1206) target = $region36
      $region35: #{tpu_custom_call.1} parent=31 // pred_region
        %s1209 = smul.u32 64, %s14
      $region36: #{tpu_custom_call.1} parent=31 // pred_fallthru
        _
    $region32: #{tpu_custom_call.1} parent=5 // pred_fallthru
      _
    %p1210 = scmp.le.s32.totalorder 2, %s9
    // Predicated region
    $region37: #{tpu_custom_call.1} parent=5 // pred_check
      %p1211 = pneg %p1210
    $region38: #{tpu_custom_call.1} parent=5 // pred_check_branch
      %1213 = sbr.rel (%p1211) target = $region40
    $region39: #{tpu_custom_call.1} parent=5 // pred_region
      %s1214 = ssub.s32 %s9, 2
      // Predicated region
      $region41: #{tpu_custom_call.1} parent=39 // pred_check
        %p1215 = pneg %p106
      $region42: #{tpu_custom_call.1} parent=39 // pred_check_branch
        %1217 = sbr.rel (%p1215) target = $region44
      $region43: #{tpu_custom_call.1} parent=39 // pred_region
        %s1218 = smul.u32 64, %s15
        %p1219 = scmp.lt.s32.totalorder %s1218, 127
        %s1220 = scalar_select %p1219, %s1218, 127
        %s1221 = smul.addr %s1220, 4
        %s1222 = scalar_lea.vmem %s3, %s1221
      $region44: #{tpu_custom_call.1} parent=39 // pred_fallthru
        _
    $region40: #{tpu_custom_call.1} parent=5 // pred_fallthru
      _
  $region6: #{tpu_custom_call.1} parent=0 // loop_footer
    %s13 = sadd.s32 1, %s9
  $region7: #{tpu_custom_call.1} parent=0 // loop_footer_branch
    %8 = sbr.rel target = $region3
  $region8: #{tpu_custom_call.1} parent=0 // loop_exit
    _

</llo_original>
